<compile_context>
chip_gen: v7x
topology: tpu7x:2x2x1
jax: 0.10.0
libtpu: 0.0.40
codegen_flags: <defaults>
</compile_context>

<pallas_src>
import functools

import jax
import jax.numpy as jnp
from jax.experimental import pallas as pl
from jax.experimental.pallas import tpu as pltpu


def _round_up(x: int, m: int) -> int:
    return (x + m - 1) // m * m


def _cdiv(a: int, b: int) -> int:
    return -(-a // b)


def _mean_pool_kernel(node_id_ref, feat_ref, cnt_ref, out_ref, acc_ref, *, n_valid):
    # node_id_ref: (1, TN) int32   feat_ref: (TN, TF)   cnt_ref: (G, 1) f32
    # out_ref:     (G, TF)         acc_ref:  (G, TF) f32 scratch
    n = pl.program_id(1)                     # reduction (node-tile) axis, last in grid
    tn, tf = feat_ref.shape
    G = acc_ref.shape[0]

    @pl.when(n == 0)
    def _():
        acc_ref[...] = jnp.zeros_like(acc_ref)

    feat = feat_ref[...]                     # native dtype — no f32 upcast
    ids = node_id_ref[...]                   # (1, TN) int32

    if n_valid % tn != 0:                    # static: only emitted for ragged N
        # Rows past n_valid in the last tile were never DMA'd and hold garbage
        # (possibly NaN); zero them before the MXU dot (0 * NaN = NaN otherwise).
        row = jax.lax.broadcasted_iota(jnp.int32, (tn, tf), 0) + n * tn
        feat = jnp.where(row < n_valid, feat, jnp.zeros((), feat.dtype))

    # One-hot segment membership built directly in the feature dtype
    # (single compare + select; 0/1 is exact in bf16).
    seg = jax.lax.broadcasted_iota(jnp.int32, (G, tn), 0)
    onehot = jnp.where(seg == ids, jnp.ones((), feat.dtype), jnp.zeros((), feat.dtype))

    # Segment-sum via MXU: (G, TN) @ (TN, TF) -> (G, TF), f32 accumulate.
    acc_ref[...] += jnp.dot(onehot, feat, preferred_element_type=jnp.float32)

    @pl.when(n == pl.num_programs(1) - 1)
    def _():
        # sum / count (0/0 -> NaN for empty graphs, matching the torch module)
        out_ref[...] = (acc_ref[...] / cnt_ref[...]).astype(out_ref.dtype)


def _choose_f_tile(F: int, cap: int):
    """Feature tile: one full-F tile when it fits, else balanced & 128-aligned."""
    F_a = _round_up(F, 128)
    # v7x has 2 TensorCores: guarantee >= 2 blocks on the "parallel" F axis whenever
    # it can be split (no-op on v5e/v6e, where parallel vs arbitrary is neutral).
    if F_a >= 256:
        cap = min(cap, _round_up(_cdiv(F_a, 2), 128))
    if F_a <= cap:
        return F, 1                          # block dim == full array dim (any F)
    n_f = _cdiv(F_a, cap)
    TF = _round_up(_cdiv(F_a, n_f), 128)     # balanced, lane-aligned
    return TF, _cdiv(F, TF)


def _choose_n_tile(N: int, cap: int):
    """Node tile (reduction axis): one full-N tile when it fits, else balanced."""
    if N <= cap:
        return N, 1                          # block dim == full array dim (any N)
    N_a = _round_up(N, 128)
    n_n = _cdiv(N_a, cap)
    TN = _round_up(_cdiv(N_a, n_n), 128)     # balanced, 128-aligned (ids lane dim)
    return TN, _cdiv(N, TN)


def mean_pool(node_feat: jax.Array, node_id: jax.Array, num_graphs: int,
              *, tn: int = 1024, tf: int = 512) -> jax.Array:
    """node_feat: (N, F); node_id: (N,) int segment ids in [0, num_graphs)."""
    N, F = node_feat.shape
    dtype = node_feat.dtype
    itemsize = jnp.dtype(dtype).itemsize

    G_pad = _round_up(num_graphs, 8)         # sublane-dense accumulator / output rows

    # ---- tile selection under an explicit VMEM budget ---------------------------
    def _vmem_est(TN_, TF_):
        lane_tf = max(_round_up(TF_, 128), 128)
        return (2 * TN_ * lane_tf * itemsize          # feat double-buffer
                + 2 * 8 * _round_up(TN_, 128) * 4     # ids double-buffer (padded)
                + 2 * G_pad * 128 * 4                 # counts double-buffer (padded)
                + 2 * G_pad * lane_tf * itemsize      # out double-buffer
                + G_pad * lane_tf * 4)                # f32 accumulator scratch

    budget = 36 * (1 << 20)                  # fits everywhere once vmem_limit is raised
    tf_cap, tn_cap = tf, tn
    while True:
        TF, n_f = _choose_f_tile(F, tf_cap)
        TN, n_n = _choose_n_tile(N, tn_cap)
        if _vmem_est(TN, TF) <= budget or (tf_cap <= 128 and tn_cap <= 128):
            break
        lane_tf = max(_round_up(TF, 128), 128)
        g_terms = (2 * itemsize + 4) * G_pad * lane_tf     # acc + out buffers
        feat_terms = 2 * TN * lane_tf * itemsize           # feature stream buffers
        if (g_terms >= feat_terms and tf_cap > 128) or tn_cap <= 128:
            tf_cap = max(128, tf_cap // 2)
        else:
            tn_cap = max(128, tn_cap // 2)

    F_out = n_f * TF                          # == F when F fits a single tile
    N_ids = n_n * TN

    vmem_est = _vmem_est(TN, TF)
    vmem_limit = None
    if vmem_est > 12 * (1 << 20):
        # v5e default scoped VMEM is 16 MiB; raising it is safe (128 MiB physical).
        # Stay well under v7x's 64 MiB physical VMEM.
        vmem_limit = min(48 * (1 << 20), max(vmem_est * 5 // 4, 16 * (1 << 20)))

    # ---- tiny side inputs (no full node_feat copy) -------------------------------
    ids32 = node_id.astype(jnp.int32).reshape(1, N)
    if N_ids > N:
        # Pad with an out-of-range id so padded positions never hit the one-hot.
        ids_p = jnp.pad(ids32, ((0, 0), (0, N_ids - N)), constant_values=G_pad)
    else:
        ids_p = ids32

    # Per-graph node counts: O(N) wrapper-side work (precondition: node_id < num_graphs).
    counts = jax.ops.segment_sum(
        jnp.ones((N,), jnp.float32), node_id.astype(jnp.int32), num_segments=G_pad
    ).reshape(G_pad, 1)

    kernel = functools.partial(_mean_pool_kernel, n_valid=N)

    out_p = pl.pallas_call(
        kernel,
        out_shape=jax.ShapeDtypeStruct((G_pad, F_out), dtype),
        grid_spec=pltpu.PrefetchScalarGridSpec(
            num_scalar_prefetch=0,
            grid=(n_f, n_n),                                   # (parallel F, reduction N last)
            in_specs=[
                pl.BlockSpec((1, TN), lambda f, n: (0, n)),     # node ids (padded, tiny)
                pl.BlockSpec((TN, TF), lambda f, n: (n, f)),    # node features (unpadded HBM)
                pl.BlockSpec((G_pad, 1), lambda f, n: (0, 0)),  # per-graph counts
            ],
            out_specs=pl.BlockSpec((G_pad, TF), lambda f, n: (0, f)),
            scratch_shapes=[pltpu.VMEM((G_pad, TF), jnp.float32)],  # segment-sum accumulator
        ),
        compiler_params=pltpu.CompilerParams(
            dimension_semantics=("parallel", "arbitrary"),
            vmem_limit_bytes=vmem_limit,
        ),
    )(ids_p, node_feat, counts)

    return out_p[:num_graphs, :F]


def _reference(node_feat, node_id, num_graphs):
    ref_sum = jax.ops.segment_sum(node_feat, node_id, num_segments=num_graphs)
    ref_cnt = jax.ops.segment_sum(jnp.ones_like(node_feat), node_id,
                                  num_segments=num_graphs)
    return ref_sum / ref_cnt


if __name__ == "__main__":
    key = jax.random.PRNGKey(0)
    k_feat, k_id, k_feat2, k_id2 = jax.random.split(key, 4)

    # --- small test at the module's natural shapes --------------------------------
    num_nodes, feature_size, num_graphs = 16, 32, 4
    node_feat = jax.random.normal(k_feat, (num_nodes, feature_size), dtype=jnp.float32)
    # ensure every graph has at least one node (avoid 0/0, as the torch module assumes)
    base_ids = jnp.arange(num_graphs, dtype=jnp.int32)
    extra_ids = jax.random.randint(
        k_id, (num_nodes - num_graphs,), 0, num_graphs, dtype=jnp.int32)
    node_id = jnp.concatenate([base_ids, extra_ids], axis=0)

    pooled = mean_pool(node_feat, node_id, num_graphs)
    jax.block_until_ready(pooled)
    ref = _reference(node_feat, node_id, num_graphs)
    assert pooled.shape == (num_graphs, feature_size)
    assert jnp.allclose(pooled, ref, atol=1e-5, rtol=1e-5), "mismatch vs reference"

    # --- ragged-tile test (exercises unpadded streaming + in-kernel tail masking) --
    num_nodes2, feature_size2, num_graphs2 = 1000, 300, 10
    node_feat2 = jax.random.normal(k_feat2, (num_nodes2, feature_size2), dtype=jnp.float32)
    base_ids2 = jnp.arange(num_graphs2, dtype=jnp.int32)
    extra_ids2 = jax.random.randint(
        k_id2, (num_nodes2 - num_graphs2,), 0, num_graphs2, dtype=jnp.int32)
    node_id2 = jnp.concatenate([base_ids2, extra_ids2], axis=0)

    pooled2 = mean_pool(node_feat2, node_id2, num_graphs2, tn=256, tf=128)
    jax.block_until_ready(pooled2)
    ref2 = _reference(node_feat2, node_id2, num_graphs2)
    assert pooled2.shape == (num_graphs2, feature_size2)
    assert jnp.allclose(pooled2, ref2, atol=1e-4, rtol=1e-4), "mismatch vs reference (ragged)"

    print("KERNEL_OK")
</pallas_src>

<mosaic_0001>
module attributes {stable_mosaic.version = 11 : i64} {
  func.func @_mean_pool_kernel(%arg0: i32, %arg1: i32, %arg2: memref<1x16xi32, #tpu.memory_space<vmem>>, %arg3: memref<16x32xf32, #tpu.memory_space<vmem>>, %arg4: memref<8x1xf32, #tpu.memory_space<vmem>>, %arg5: memref<8x32xf32, #tpu.memory_space<vmem>>, %arg6: memref<8x32xf32, #tpu.memory_space<vmem>>) attributes {dimension_semantics = [#tpu.dimension_semantics<parallel>, #tpu.dimension_semantics<arbitrary>], iteration_bounds = array<i64: 1, 1>, scalar_prefetch = 0 : i64, scratch_operands = 1 : i64, tpu.core_type = #tpu.core_type<tc>, window_params = [{transform_indices = @transform_0, window_bounds = array<i64: 1, 16>}, {transform_indices = @transform_1, window_bounds = array<i64: 16, 32>}, {pipeline_mode = #tpu.pipeline_mode<synchronous>, transform_indices = @transform_2, window_bounds = array<i64: 8, 1>}, {transform_indices = @transform_3, window_bounds = array<i64: 8, 32>}]} {
    %c0_i32 = arith.constant 0 : i32
    %0 = arith.cmpi eq, %arg1, %c0_i32 : i32
    %1 = arith.extui %0 : i1 to i32
    %c0_i32_0 = arith.constant 0 : i32
    %2 = arith.cmpi ne, %1, %c0_i32_0 : i32
    scf.if %2 {
      %cst_12 = arith.constant 0.000000e+00 : f32
      %18 = vector.broadcast %cst_12 : f32 to vector<8x32xf32>
      %c0_13 = arith.constant 0 : index
      %c0_14 = arith.constant 0 : index
      %19 = vector.load %arg6[%c0_13, %c0_14] : memref<8x32xf32, #tpu.memory_space<vmem>>, vector<8x32xf32>
      tpu.vector_store %arg6[%c0_13, %c0_14], %18 {strides = array<i32>} : memref<8x32xf32, #tpu.memory_space<vmem>>, vector<8x32xf32>,
    } else {
    }
    %c0 = arith.constant 0 : index
    %c0_1 = arith.constant 0 : index
    %3 = vector.load %arg3[%c0, %c0_1] : memref<16x32xf32, #tpu.memory_space<vmem>>, vector<16x32xf32>
    %c0_2 = arith.constant 0 : index
    %c0_3 = arith.constant 0 : index
    %4 = vector.load %arg2[%c0_2, %c0_3] : memref<1x16xi32, #tpu.memory_space<vmem>>, vector<1x16xi32>
    %5 = tpu.iota {dimensions = array<i32: 0>} : vector<8x16xi32>
    %6 = vector.broadcast %4 : vector<1x16xi32> to vector<8x16xi32>
    %7 = arith.cmpi eq, %5, %6 : vector<8x16xi32>
    %cst = arith.constant 1.000000e+00 : f32
    %cst_4 = arith.constant 0.000000e+00 : f32
    %8 = vector.broadcast %cst : f32 to vector<8x16xf32>
    %9 = vector.broadcast %cst_4 : f32 to vector<8x16xf32>
    %10 = arith.select %7, %8, %9 : vector<8x16xi1>, vector<8x16xf32>
    %c0_5 = arith.constant 0 : index
    %c0_6 = arith.constant 0 : index
    %11 = vector.load %arg6[%c0_5, %c0_6] : memref<8x32xf32, #tpu.memory_space<vmem>>, vector<8x32xf32>
    %cst_7 = arith.constant dense<0.000000e+00> : vector<8x32xf32>
    %12 = tpu.matmul %10, %3, %cst_7 {dimension_numbers = #tpu.dot_dimension_numbers<[1], [0], [0], [1], [0, 0, 1, 1], [], []>} : vector<8x16xf32>, vector<16x32xf32>, vector<8x32xf32> -> vector<8x32xf32>
    %13 = arith.addf %11, %12 : vector<8x32xf32>
    %c0_8 = arith.constant 0 : index
    %c0_9 = arith.constant 0 : index
    %14 = vector.load %arg6[%c0_8, %c0_9] : memref<8x32xf32, #tpu.memory_space<vmem>>, vector<8x32xf32>
    tpu.vector_store %arg6[%c0_8, %c0_9], %13 {strides = array<i32>} : memref<8x32xf32, #tpu.memory_space<vmem>>, vector<8x32xf32>,
    %c0_i32_10 = arith.constant 0 : i32
    %15 = arith.cmpi eq, %arg1, %c0_i32_10 : i32
    %16 = arith.extui %15 : i1 to i32
    %c0_i32_11 = arith.constant 0 : i32
    %17 = arith.cmpi ne, %16, %c0_i32_11 : i32
    scf.if %17 {
      %c0_12 = arith.constant 0 : index
      %c0_13 = arith.constant 0 : index
      %18 = vector.load %arg6[%c0_12, %c0_13] : memref<8x32xf32, #tpu.memory_space<vmem>>, vector<8x32xf32>
      %c0_14 = arith.constant 0 : index
      %c0_15 = arith.constant 0 : index
      %19 = vector.load %arg4[%c0_14, %c0_15] : memref<8x1xf32, #tpu.memory_space<vmem>>, vector<8x1xf32>
      %20 = vector.broadcast %19 : vector<8x1xf32> to vector<8x32xf32>
      %21 = arith.divf %18, %20 : vector<8x32xf32>
      %c0_16 = arith.constant 0 : index
      %c0_17 = arith.constant 0 : index
      %22 = vector.load %arg5[%c0_16, %c0_17] : memref<8x32xf32, #tpu.memory_space<vmem>>, vector<8x32xf32>
      tpu.vector_store %arg5[%c0_16, %c0_17], %21 {strides = array<i32>} : memref<8x32xf32, #tpu.memory_space<vmem>>, vector<8x32xf32>,
    } else {
    }
    return
  }
  func.func @transform_0(%arg0: i32, %arg1: i32) -> (i32, i32) {
    %c0_i32 = arith.constant 0 : i32
    %c0_i32_0 = arith.constant 0 : i32
    return %c0_i32, %arg1 : i32, i32
  }
  func.func @transform_1(%arg0: i32, %arg1: i32) -> (i32, i32) {
    %c0_i32 = arith.constant 0 : i32
    return %arg1, %arg0 : i32, i32
  }
  func.func @transform_2(%arg0: i32, %arg1: i32) -> (i32, i32) {
    %c0_i32 = arith.constant 0 : i32
    %c0_i32_0 = arith.constant 0 : i32
    %c0_i32_1 = arith.constant 0 : i32
    return %c0_i32, %c0_i32_0 : i32, i32
  }
  func.func @transform_3(%arg0: i32, %arg1: i32) -> (i32, i32) {
    %c0_i32 = arith.constant 0 : i32
    %c0_i32_0 = arith.constant 0 : i32
    return %c0_i32, %arg0 : i32, i32
  }
}

</mosaic_0001>

<llo_original>
// kernel: tpu_custom_call.1
$region0: #{tpu_custom_call.1}
  #allocation0 [shape = 'u32[]', space=smem, size = 0x4, offset = 0x4, fixed_abs, tag = 'smem constant byte address 0x4 - core index']
  #allocation1 [shape = 'u32[144,128]{1,0:T(1,128)}', space=vmem, size = 0x12000, scoped, tag = 'internal scratch']
  #allocation2 [shape = 'f32[8,32]{1,0:T(8,128)}', space=vmem, size = 0x1000, scoped, tag = 'scratch operand']
  %s0 = inlined_call_operand.vmem [shape: s32[1,16], index: 0, kind: input, shape index: {}]
  %s1 = inlined_call_operand.hbm [shape: f32[16,32], index: 1, kind: input, shape index: {}]
  %s2 = inlined_call_operand.vmem [shape: f32[8,1], index: 2, kind: input, shape index: {}]
  %s3 = inlined_call_operand.hbm [shape: f32[8,32], index: 3, kind: output, shape index: {}]
  %s4 = sld [smem:[#allocation0]]
  $region34: #{tpu_custom_call.1} parent=0
    _
  %s6 = ssub.s32 1, %s4
  %s7 = scalar_select 0, %s6, %s4
  $region1: #{tpu_custom_call.1} parent=0
    #allocation3 [shape = 'u8[8192]{0}', space=vmem, size = 0x2000, scoped, tag = 'input window, operand 1, single buffered']
    #allocation4 [shape = 's32[1]{0}', space=sflag, size = 0x4, scoped, tag = 'scoped memory for tpu_custom_call.1']
    #allocation5 [shape = 's32[1]{0}', space=sflag, size = 0x4, scoped, tag = 'scoped memory for tpu_custom_call.1']
    #allocation6 [shape = 'u8[4096]{0}', space=vmem, size = 0x1000, scoped, tag = 'output window, operand 0, single buffered']
    %8 = vsyncpa [#allocation4], 0
    %9 = vsyncpa [#allocation5], 0
    // Predicated region
    $region2: #{tpu_custom_call.1} parent=1 // pred_check
      _
    $region3: #{tpu_custom_call.1} parent=1 // pred_check_branch
      %11 = sbr.rel (0) target = $region5
    $region4: #{tpu_custom_call.1} parent=1 // pred_region
      _
    $region5: #{tpu_custom_call.1} parent=1 // pred_fallthru
      _
    // Predicated region
    $region6: #{tpu_custom_call.1} parent=1 // pred_check
      _
    $region7: #{tpu_custom_call.1} parent=1 // pred_check_branch
      %13 = sbr.rel (0) target = $region9
    $region8: #{tpu_custom_call.1} parent=1 // pred_region
      %s15 = ssub.s32 256, 256
      %16 = vsyncadd [#allocation4], %s15
      %s17 = sshll.u32 [#allocation3], 4
      %s18 = int_to_ptr.vmem [resolvable:$true] %s17
      %23 = dma.hbm_to_vmem [thread:$0]  %s1, 256, %s18, [#allocation4], 128, 128, 8
    $region9: #{tpu_custom_call.1} parent=1 // pred_fallthru
      _
    // Predicated region
    $region10: #{tpu_custom_call.1} parent=1 // pred_check
      _
    $region11: #{tpu_custom_call.1} parent=1 // pred_check_branch
      %25 = sbr.rel (0) target = $region13
    $region12: #{tpu_custom_call.1} parent=1 // pred_region
      _
    $region13: #{tpu_custom_call.1} parent=1 // pred_fallthru
      _
    // Predicated region
    $region14: #{tpu_custom_call.1} parent=1 // pred_check
      _
    $region15: #{tpu_custom_call.1} parent=1 // pred_check_branch
      %27 = sbr.rel (0) target = $region17
    $region16: #{tpu_custom_call.1} parent=1 // pred_region
      %28 = dma.done [#allocation4], 256
    $region17: #{tpu_custom_call.1} parent=1 // pred_fallthru
      _
    %p29 = scmp.eq.s32.totalorder 0, 0
    // Predicated region
    $region18: #{tpu_custom_call.1} parent=1 // pred_check
      %p30 = pneg %p29
    $region19: #{tpu_custom_call.1} parent=1 // pred_check_branch
      %32 = sbr.rel (%p30) target = $region21
    $region20: #{tpu_custom_call.1} parent=1 // pred_region
      %vm33 = vcmask 261120
      %34 = vst.msk [vmem:[#allocation2] sm:$0xff] %vm33, 0.0
    $region21: #{tpu_custom_call.1} parent=1 // pred_fallthru
      _
    %v35 = vld [vmem:[#allocation3] sm:$0xff]
    %v36 = vld [vmem:[#allocation3 + $0x8] sm:$0xff]
    %v37 = vld [vmem:[%s0] sm:$0x1]
    %v38 = vlaneseq
    %v39 = vshrl.u32 %v38, 7
    %v40 = vlaneseq
    %v41 = vshrl.u32 %v40, 7
    %v42 = vsub.s32 0, %v41
    %v43 = vrot.slane %v37, %v42
    %vm44 = vcmp.eq.s32.totalorder %v39, %v43
    %v45 = vsel %vm44, 1.0, 0.0
    %v46 = vld [vmem:[#allocation2] sm:$0xff]
    %vm47 = vcmask 130048
    %v49 = vsel %vm47, %v45, 0
    %51 = vmatprep.subr.mxu0 0.0
    %52 = vmatpush1.msra.mxu0 %v35
    %53 = vmatprep.subr.mxu0 0.0
    %54 = vmatpush1.msra.mxu0 %v36
    %55 = vmatprep.subr.mxu0 0.0
    %56 = vmatpush1.msra.mxu0 0.0
    %57 = vmatprep.subr.mxu0 0.0
    %58 = vmatpush1.msra.mxu0 0.0
    %59 = vmatprep.subr.mxu0 0.0
    %60 = vmatpush1.msra.mxu0 0.0
    %61 = vmatprep.subr.mxu0 0.0
    %62 = vmatpush1.msra.mxu0 0.0
    %63 = vmatprep.subr.mxu0 0.0
    %64 = vmatpush1.msra.mxu0 0.0
    %65 = vmatprep.subr.mxu0 0.0
    %66 = vmatpush1.msra.mxu0 0.0
    %67 = vmatprep.subr.mxu0 0.0
    %68 = vmatpush1.msra.mxu0 0.0
    %69 = vmatprep.subr.mxu0 0.0
    %70 = vmatpush1.msra.mxu0 0.0
    %71 = vmatprep.subr.mxu0 0.0
    %72 = vmatpush1.msra.mxu0 0.0
    %73 = vmatprep.subr.mxu0 0.0
    %74 = vmatpush1.msra.mxu0 0.0
    %75 = vmatprep.subr.mxu0 0.0
    %76 = vmatpush1.msra.mxu0 0.0
    %77 = vmatprep.subr.mxu0 0.0
    %78 = vmatpush1.msra.mxu0 0.0
    %79 = vmatprep.subr.mxu0 0.0
    %80 = vmatpush1.msra.mxu0 0.0
    %81 = vmatprep.subr.mxu0 0.0
    %82 = vmatpush1.msra.mxu0 0.0
    %83 = vmatprep.subr.mxu0 0.0
    %84 = vmatpush1.msra.mxu0 0.0
    %85 = vmatprep.subr.mxu0 0.0
    %86 = vmatpush1.msra.mxu0 0.0
    %87 = vmatprep.subr.mxu0 0.0
    %88 = vmatpush1.msra.mxu0 0.0
    %89 = vmatprep.subr.mxu0 0.0
    %90 = vmatpush1.msra.mxu0 0.0
    %91 = vmatprep.subr.mxu0 0.0
    %92 = vmatpush1.msra.mxu0 0.0
    %93 = vmatprep.subr.mxu0 0.0
    %94 = vmatpush1.msra.mxu0 0.0
    %95 = vmatprep.subr.mxu0 0.0
    %96 = vmatpush1.msra.mxu0 0.0
    %97 = vmatprep.subr.mxu0 0.0
    %98 = vmatpush1.msra.mxu0 0.0
    %99 = vmatprep.subr.mxu0 0.0
    %100 = vmatpush1.msra.mxu0 0.0
    %101 = vmatprep.subr.mxu0 0.0
    %102 = vmatpush1.msra.mxu0 0.0
    %103 = vmatprep.subr.mxu0 0.0
    %104 = vmatpush1.msra.mxu0 0.0
    %105 = vmatprep.subr.mxu0 0.0
    %106 = vmatpush1.msra.mxu0 0.0
    %107 = vmatprep.subr.mxu0 0.0
    %108 = vmatpush1.msra.mxu0 0.0
    %109 = vmatprep.subr.mxu0 0.0
    %110 = vmatpush1.msra.mxu0 0.0
    %111 = vmatprep.subr.mxu0 0.0
    %112 = vmatpush1.msra.mxu0 0.0
    %113 = vmatprep.subr.mxu0 0.0
    %114 = vmatpush1.msra.mxu0 0.0
    %115 = vmatprep.mubr.f32.mxu0 0.0
    %116 = vmatmul.mubr.f32.gmra.mrb[0].mxu0 %v49
    %v117 = vpop.f32.mrb[0].mxu0
    %v118 = vadd.f32 0.0, %v117
    %v119 = vpop.f32.mrb[0].mxu0
    %120 = vdwg.mxu0
    %v121 = vadd.f32 %v46, %v118
    %vm122 = vcmask 261120
    %123 = vst.msk [vmem:[#allocation2] sm:$0xff] %vm122, %v121
    // Predicated region
    $region22: #{tpu_custom_call.1} parent=1 // pred_check
      %p124 = pneg %p29
    $region23: #{tpu_custom_call.1} parent=1 // pred_check_branch
      %126 = sbr.rel (%p124) target = $region25
    $region24: #{tpu_custom_call.1} parent=1 // pred_region
      %v127 = vld [vmem:[#allocation2] sm:$0xff]
      %v128 = vld [vmem:[%s2] sm:$0xff]
      %130 = vset.pattern.permute.xlu0 0
      %131 = vperm.xlu0 %130, %v128
      %v132 = vpop.permute.xlu0 %131
      %v134 = vrcp.pop %v132
      %v135 = vmul.f32 %v127, %v134
      %136 = vst.msk [vmem:[#allocation6] sm:$0xff] %vm122, %v135
    $region25: #{tpu_custom_call.1} parent=1 // pred_fallthru
      _
    // Predicated region
    $region26: #{tpu_custom_call.1} parent=1 // pred_check
      _
    $region27: #{tpu_custom_call.1} parent=1 // pred_check_branch
      %138 = sbr.rel (0) target = $region29
    $region28: #{tpu_custom_call.1} parent=1 // pred_region
      %s140 = ssub.s32 128, 128
      %141 = vsyncadd [#allocation5], %s140
      %s143 = sshll.u32 [#allocation6], 4
      %s144 = int_to_ptr.vmem [resolvable:$true] %s143
      %146 = dma.vmem_to_hbm [thread:$0]  %s144, 128, %s3, [#allocation5]
    $region29: #{tpu_custom_call.1} parent=1 // pred_fallthru
      _
    // Predicated region
    $region30: #{tpu_custom_call.1} parent=1 // pred_check
      _
    $region31: #{tpu_custom_call.1} parent=1 // pred_check_branch
      %148 = sbr.rel (0) target = $region33
    $region32: #{tpu_custom_call.1} parent=1 // pred_region
      %149 = dma.done [#allocation5], 128
    $region33: #{tpu_custom_call.1} parent=1 // pred_fallthru
      _
    %150 = vsyncpa [#allocation4], 1
    %151 = vsyncpa [#allocation5], 1

</llo_original>
